<compile_context>
chip_gen: v5e
topology: v5e:2x2
jax: 0.10.0
libtpu: 0.0.40
codegen_flags: <defaults>
</compile_context>

<pallas_src>
import jax
import jax.numpy as jnp
from jax.experimental import pallas as pl
from jax.experimental.pallas import tpu as pltpu


def _copy_kernel(x_ref, o_ref):
    # Sliced-input path: the block already contains exactly channels 0 and 1
    # (flattened). Whole-tile, unmasked copy.
    o_ref[...] = x_ref[...]


def _slice_kernel(x_ref, o_ref):
    # Full-row path: block carries all C channels flattened; keep the first
    # 2*D lanes. Output store is still a whole-tile store.
    o_ref[...] = x_ref[:, : o_ref.shape[-1]]


def _pick_tile_rows(n_rows, in_cols, out_cols, itemsize):
    """Largest batch tile whose double-buffered input+output blocks fit
    comfortably in scoped VMEM on all generations (v5e default 16 MiB)."""
    budget = 12 * 1024 * 1024
    per_row = (in_cols + out_cols) * itemsize * 2  # x2: double buffering
    tb = budget // max(per_row, 1)
    tb = min(tb, 2048)  # big enough to amortize ~0.35us per-grid-step overhead
    if tb >= n_rows:
        return n_rows  # single batch block: block dim == array dim, always legal
    tb = (tb // 32) * 32  # sublane-safe for f32 (8) / bf16 (16) / int8 (32)
    return max(tb, 32)


def stacking(x: jax.Array, *, tile_rows: int | None = None) -> jax.Array:
    """Pallas equivalent of torch.hstack((x[:, 0, :], x[:, 1, :]))."""
    B, C, D = x.shape
    if C < 2:
        raise ValueError("stacking requires at least 2 channels")

    out_cols = 2 * D
    row_cols = C * D
    itemsize = jnp.dtype(x.dtype).itemsize

    # Free view: row b == [x[b,0,:], x[b,1,:], ..., x[b,C-1,:]].
    x_flat = x.reshape(B, row_cols)

    # Channel-sliced DMA path is legal only when the input block's last dim
    # (2*D) equals the full row width or is a multiple of 128 lanes.
    sliced_ok = (out_cols == row_cols) or (out_cols % 128 == 0)
    in_cols = out_cols if sliced_ok else row_cols
    kernel = _copy_kernel if sliced_ok else _slice_kernel

    if tile_rows is None:
        tb = _pick_tile_rows(B, in_cols, out_cols, itemsize)
    else:
        tb = min(tile_rows, B)
    grid = (pl.cdiv(B, tb),)

    return pl.pallas_call(
        kernel,
        out_shape=jax.ShapeDtypeStruct((B, out_cols), x.dtype),
        grid=grid,
        in_specs=[pl.BlockSpec((tb, in_cols), lambda i: (i, 0))],
        out_specs=pl.BlockSpec((tb, out_cols), lambda i: (i, 0)),
        compiler_params=pltpu.CompilerParams(
            dimension_semantics=("parallel",)  # lets v7x shard batch tiles over 2 TCs
        ),
    )(x_flat)


if __name__ == "__main__":
    key = jax.random.PRNGKey(0)

    # Case 1: the module's small shape — batch=2, channels=4, features=16
    # (exercises the full-row path; blocks equal full array dims).
    B, C, D = 2, 4, 16
    x = jax.random.normal(key, (B, C, D), dtype=jnp.float32)
    out = jax.block_until_ready(stacking(x))
    ref = jnp.concatenate([x[:, 0, :], x[:, 1, :]], axis=1)
    assert out.shape == (B, 2 * D)
    assert jnp.allclose(out, ref), "mismatch vs reference (case 1)"

    # Case 2: lane-aligned feature dim + multi-block batch tiling
    # (exercises the channel-sliced DMA path and a partial trailing block).
    B2, C2, D2 = 40, 4, 128
    x2 = jax.random.normal(jax.random.PRNGKey(0), (B2, C2, D2), dtype=jnp.float32)
    out2 = jax.block_until_ready(stacking(x2, tile_rows=16))
    ref2 = jnp.concatenate([x2[:, 0, :], x2[:, 1, :]], axis=1)
    assert out2.shape == (B2, 2 * D2)
    assert jnp.allclose(out2, ref2), "mismatch vs reference (case 2)"

    # Case 3: C == 2 (output == full flattened row, sliced path, bf16 dtype).
    B3, C3, D3 = 64, 2, 64
    x3 = jax.random.normal(jax.random.PRNGKey(0), (B3, C3, D3), dtype=jnp.bfloat16)
    out3 = jax.block_until_ready(stacking(x3))
    ref3 = jnp.concatenate([x3[:, 0, :], x3[:, 1, :]], axis=1)
    assert out3.shape == (B3, 2 * D3)
    assert jnp.array_equal(out3, ref3), "mismatch vs reference (case 3)"

    print("KERNEL_OK")
</pallas_src>

<mosaic_0001>
module attributes {stable_mosaic.version = 11 : i64} {
  func.func @_slice_kernel(%arg0: i32, %arg1: memref<2x64xf32, #tpu.memory_space<vmem>>, %arg2: memref<2x32xf32, #tpu.memory_space<vmem>>) attributes {dimension_semantics = [#tpu.dimension_semantics<parallel>], iteration_bounds = array<i64: 1>, scalar_prefetch = 0 : i64, scratch_operands = 0 : i64, tpu.core_type = #tpu.core_type<tc>, window_params = [{transform_indices = @transform_0, window_bounds = array<i64: 2, 64>}, {transform_indices = @transform_1, window_bounds = array<i64: 2, 32>}]} {
    %c0 = arith.constant 0 : index
    %c0_0 = arith.constant 0 : index
    %0 = vector.load %arg1[%c0, %c0_0] : memref<2x64xf32, #tpu.memory_space<vmem>>, vector<2x32xf32>
    %c0_1 = arith.constant 0 : index
    %c0_2 = arith.constant 0 : index
    %1 = vector.load %arg2[%c0_1, %c0_2] : memref<2x32xf32, #tpu.memory_space<vmem>>, vector<2x32xf32>
    tpu.vector_store %arg2[%c0_1, %c0_2], %0 {strides = array<i32>} : memref<2x32xf32, #tpu.memory_space<vmem>>, vector<2x32xf32>,
    return
  }
  func.func @transform_0(%arg0: i32) -> (i32, i32) {
    %c0_i32 = arith.constant 0 : i32
    %c0_i32_0 = arith.constant 0 : i32
    return %arg0, %c0_i32 : i32, i32
  }
  func.func @transform_1(%arg0: i32) -> (i32, i32) {
    %c0_i32 = arith.constant 0 : i32
    %c0_i32_0 = arith.constant 0 : i32
    return %arg0, %c0_i32 : i32, i32
  }
}

</mosaic_0001>

<llo_original>
// kernel: tpu_custom_call.1
$region0: #{tpu_custom_call.1}
  #allocation0 [shape = 'u32[]', space=smem, size = 0x4, offset = 0x4, fixed_abs, tag = 'smem constant byte address 0x4 - core index']
  #allocation1 [shape = 'u32[72,128]{1,0:T(1,128)}', space=vmem, size = 0x9000, scoped, tag = 'internal scratch']
  %s0 = inlined_call_operand.hbm [shape: f32[2,64], index: 0, kind: input, shape index: {}]
  %s1 = inlined_call_operand.hbm [shape: f32[2,32], index: 1, kind: output, shape index: {}]
  %s2 = sld [smem:[#allocation0]]
  $region18: #{tpu_custom_call.1} parent=0
    _
  %s4 = ssub.s32 1, %s2
  %s5 = scalar_select 0, %s4, %s2
  $region1: #{tpu_custom_call.1} parent=0
    #allocation2 [shape = 'u8[1024]{0}', space=vmem, size = 0x400, scoped, tag = 'input window, operand 0, single buffered']
    #allocation3 [shape = 's32[1]{0}', space=sflag, size = 0x4, scoped, tag = 'scoped memory for tpu_custom_call.1']
    #allocation4 [shape = 's32[1]{0}', space=sflag, size = 0x4, scoped, tag = 'scoped memory for tpu_custom_call.1']
    #allocation5 [shape = 'u8[1024]{0}', space=vmem, size = 0x400, scoped, tag = 'output window, operand 0, single buffered']
    %6 = vsyncpa [#allocation3], 0
    %7 = vsyncpa [#allocation4], 0
    // Predicated region
    $region2: #{tpu_custom_call.1} parent=1 // pred_check
      _
    $region3: #{tpu_custom_call.1} parent=1 // pred_check_branch
      %9 = sbr.rel (0) target = $region5
    $region4: #{tpu_custom_call.1} parent=1 // pred_region
      %11 = vsyncadd [#allocation3], 0
      %s13 = sshll.u32 %s0, 4
      %s14 = int_to_ptr.hbm [resolvable:$true] %s13
      %s15 = sshll.u32 [#allocation2], 4
      %s16 = int_to_ptr.vmem [resolvable:$true] %s15
      %18 = dma.hbm_to_vmem [thread:$0]  %s14, 32, %s16, [#allocation3]
    $region5: #{tpu_custom_call.1} parent=1 // pred_fallthru
      _
    // Predicated region
    $region6: #{tpu_custom_call.1} parent=1 // pred_check
      _
    $region7: #{tpu_custom_call.1} parent=1 // pred_check_branch
      %20 = sbr.rel (0) target = $region9
    $region8: #{tpu_custom_call.1} parent=1 // pred_region
      %22 = dma.done [#allocation3], 32
    $region9: #{tpu_custom_call.1} parent=1 // pred_fallthru
      _
    %v23 = vld [vmem:[#allocation2] sm:$0x3]
    %vm24 = vcmask 254976
    %25 = vst.msk [vmem:[#allocation5] sm:$0x3] %vm24, %v23
    // Predicated region
    $region10: #{tpu_custom_call.1} parent=1 // pred_check
      _
    $region11: #{tpu_custom_call.1} parent=1 // pred_check_branch
      %27 = sbr.rel (0) target = $region13
    $region12: #{tpu_custom_call.1} parent=1 // pred_region
      %29 = vsyncadd [#allocation4], 0
      %s31 = sshll.u32 [#allocation5], 4
      %s32 = int_to_ptr.vmem [resolvable:$true] %s31
      %s33 = sshll.u32 %s1, 4
      %s34 = int_to_ptr.hbm [resolvable:$true] %s33
      %36 = dma.vmem_to_hbm [thread:$0]  %s32, 32, %s34, [#allocation4]
    $region13: #{tpu_custom_call.1} parent=1 // pred_fallthru
      _
    // Predicated region
    $region14: #{tpu_custom_call.1} parent=1 // pred_check
      _
    $region15: #{tpu_custom_call.1} parent=1 // pred_check_branch
      %38 = sbr.rel (0) target = $region17
    $region16: #{tpu_custom_call.1} parent=1 // pred_region
      %40 = dma.done [#allocation4], 32
    $region17: #{tpu_custom_call.1} parent=1 // pred_fallthru
      _
    %41 = vsyncpa [#allocation3], 1
    %42 = vsyncpa [#allocation4], 1

</llo_original>
